<compile_context>
chip_gen: v7x
topology: tpu7x:2x2x1
jax: 0.10.0
libtpu: 0.0.40
codegen_flags: <defaults>
</compile_context>

<pallas_src>
import jax
import jax.numpy as jnp
from jax.experimental import pallas as pl
from jax.experimental.pallas import tpu as pltpu


def _dtype_min_value(dtype):
    if jnp.issubdtype(dtype, jnp.floating):
        return float(jnp.finfo(dtype).min)
    return int(jnp.iinfo(dtype).min)


def _pick_tile(dim, candidates):
    """Largest candidate that exactly divides dim, else the full extent."""
    for c in candidates:
        if dim >= c and dim % c == 0:
            return c
    return dim


def _masked_max_kernel(x_ref, m_ref, o_ref):
    # x_ref: (TB, TS, TH)   m_ref: (TB, TS)   o_ref: (TB, TH)  [accumulator]
    @pl.when(pl.program_id(2) == 0)
    def _init():
        o_ref[...] = jnp.full(o_ref.shape, _dtype_min_value(o_ref.dtype), o_ref.dtype)

    x = x_ref[...]
    # penalty on the small (TB, TS) tile in f32, cast once to x's dtype —
    # avoids upcasting the whole (TB, TS, TH) block.
    pen = ((1.0 - m_ref[...].astype(jnp.float32)) * 1000000.0).astype(x.dtype)
    tile_max = jnp.max(x - pen[:, :, None], axis=1)            # (TB, TH)
    o_ref[...] = jnp.maximum(o_ref[...], tile_max)


def _max_kernel(x_ref, o_ref):
    # x_ref: (TB, TS, TH)   o_ref: (TB, TH)  [accumulator]
    @pl.when(pl.program_id(2) == 0)
    def _init():
        o_ref[...] = jnp.full(o_ref.shape, _dtype_min_value(o_ref.dtype), o_ref.dtype)

    o_ref[...] = jnp.maximum(o_ref[...], jnp.max(x_ref[...], axis=1))


def masked_global_max_pool1d(inputs, mask=None):
    """inputs: (B, S, H); mask: optional (B, S), 1.0 = keep. Returns (B, H)."""
    B, S, H = inputs.shape
    dtype = inputs.dtype
    itemsize = jnp.dtype(dtype).itemsize

    # ---- tile selection --------------------------------------------------
    # Feature (lane) axis: multiples of 128 when possible, else full extent.
    TH = _pick_tile(H, (512, 256, 128))
    # Batch (sublane) packing for dense (TB, TH) output writes.
    TB = 8 if (B >= 8 and B % 8 == 0) else B
    # Seq (reduction) axis: multiples of 128 (mask-lane constraint), sized so
    # one x tile stays within ~4 MiB (=> <=8 MiB double-buffered, v7x-safe).
    ts_budget = (4 * 1024 * 1024) // max(1, TB * TH * itemsize)
    ts_cands = tuple(c for c in (1024, 512, 256, 128) if c <= max(ts_budget, 128))
    TS = _pick_tile(S, ts_cands)

    grid = (B // TB, H // TH, S // TS)

    x_spec = pl.BlockSpec((TB, TS, TH), lambda b, h, s: (b, s, h))
    o_spec = pl.BlockSpec((TB, TH), lambda b, h, s: (b, h))   # constant over s => accumulator
    out_shape = jax.ShapeDtypeStruct((B, H), dtype)

    # VMEM budget: double-buffered input(s) + resident output, with headroom.
    x_bytes = TB * TS * TH * itemsize
    m_bytes = TB * max(TS, 128) * 4 if mask is not None else 0
    o_bytes = TB * max(TH, 128) * itemsize
    vmem_limit = min(
        max(32 * 1024 * 1024, 2 * (x_bytes + m_bytes + o_bytes) + (2 << 20)),
        64 * 1024 * 1024,
    )
    cparams = pltpu.CompilerParams(
        dimension_semantics=("parallel", "parallel", "arbitrary"),
        vmem_limit_bytes=vmem_limit,
    )

    if mask is None:
        cost = pl.CostEstimate(
            flops=B * S * H,
            transcendentals=0,
            bytes_accessed=B * S * H * itemsize + B * H * itemsize,
        )
        return pl.pallas_call(
            _max_kernel,
            out_shape=out_shape,
            grid=grid,
            in_specs=[x_spec],
            out_specs=o_spec,
            compiler_params=cparams,
            cost_estimate=cost,
        )(inputs)

    if mask.dtype == jnp.bool_:
        mask = mask.astype(jnp.float32)  # avoid 1-bit DMA; kernel needs the float anyway
    m_itemsize = jnp.dtype(mask.dtype).itemsize
    m_spec = pl.BlockSpec((TB, TS), lambda b, h, s: (b, s))
    cost = pl.CostEstimate(
        flops=3 * B * S * H,
        transcendentals=0,
        bytes_accessed=B * S * H * itemsize + B * S * m_itemsize + B * H * itemsize,
    )
    return pl.pallas_call(
        _masked_max_kernel,
        out_shape=out_shape,
        grid=grid,
        in_specs=[x_spec, m_spec],
        out_specs=o_spec,
        compiler_params=cparams,
        cost_estimate=cost,
    )(inputs, mask)


if __name__ == "__main__":
    key = jax.random.PRNGKey(0)
    kx, km = jax.random.split(key)

    # ---- small shapes implied by the module's forward: (B, S, H) ----------
    B, S, H = 2, 8, 32
    x = jax.random.normal(kx, (B, S, H), dtype=jnp.float32)
    # 1.0 = keep, 0.0 = masked-out position; keep at least one valid per row
    mask = (jax.random.uniform(km, (B, S)) > 0.3).astype(jnp.float32)
    mask = mask.at[:, 0].set(1.0)

    out = jax.block_until_ready(masked_global_max_pool1d(x, mask))
    ref = jnp.max(x - ((1.0 - mask) * 1000000.0)[..., None], axis=-2)
    assert out.shape == (B, H)
    assert jnp.allclose(out, ref, atol=1e-6), "masked path mismatch vs reference"

    out_nomask = jax.block_until_ready(masked_global_max_pool1d(x, None))
    assert jnp.allclose(out_nomask, jnp.max(x, axis=-2), atol=1e-6), "no-mask path mismatch"

    # ---- exercise the tiled accumulator path (multi-step seq reduction) ----
    B2, S2, H2 = 16, 512, 512   # -> TB=8, TH=512, TS=256, grid=(2,1,2)
    x2 = jax.random.normal(kx, (B2, S2, H2), dtype=jnp.float32)
    mask2 = (jax.random.uniform(km, (B2, S2)) > 0.5).astype(jnp.float32)
    mask2 = mask2.at[:, 0].set(1.0)
    out2 = jax.block_until_ready(masked_global_max_pool1d(x2, mask2))
    ref2 = jnp.max(x2 - ((1.0 - mask2) * 1000000.0)[..., None], axis=-2)
    assert jnp.allclose(out2, ref2, atol=1e-6), "tiled masked path mismatch vs reference"

    print("KERNEL_OK")
</pallas_src>

<mosaic_0001>
module attributes {stable_mosaic.version = 11 : i64} {
  func.func @_masked_max_kernel(%arg0: i32, %arg1: i32, %arg2: i32, %arg3: memref<2x8x32xf32, #tpu.memory_space<vmem>>, %arg4: memref<2x8xf32, #tpu.memory_space<vmem>>, %arg5: memref<2x32xf32, #tpu.memory_space<vmem>>) attributes {dimension_semantics = [#tpu.dimension_semantics<parallel>, #tpu.dimension_semantics<parallel>, #tpu.dimension_semantics<arbitrary>], iteration_bounds = array<i64: 1, 1, 1>, scalar_prefetch = 0 : i64, scratch_operands = 0 : i64, tpu.core_type = #tpu.core_type<tc>, window_params = [{transform_indices = @transform_0, window_bounds = array<i64: 2, 8, 32>}, {transform_indices = @transform_1, window_bounds = array<i64: 2, 8>}, {transform_indices = @transform_2, window_bounds = array<i64: 2, 32>}]} {
    %c0_i32 = arith.constant 0 : i32
    %0 = arith.cmpi eq, %arg2, %c0_i32 : i32
    %1 = arith.extui %0 : i1 to i32
    %c0_i32_0 = arith.constant 0 : i32
    %2 = arith.cmpi ne, %1, %c0_i32_0 : i32
    scf.if %2 {
      %cst_11 = arith.constant -3.40282347E+38 : f32
      %16 = vector.broadcast %cst_11 : f32 to vector<2x32xf32>
      %c0_12 = arith.constant 0 : index
      %c0_13 = arith.constant 0 : index
      %17 = vector.load %arg5[%c0_12, %c0_13] : memref<2x32xf32, #tpu.memory_space<vmem>>, vector<2x32xf32>
      tpu.vector_store %arg5[%c0_12, %c0_13], %16 {strides = array<i32>} : memref<2x32xf32, #tpu.memory_space<vmem>>, vector<2x32xf32>,
    } else {
    }
    %c0 = arith.constant 0 : index
    %c0_1 = arith.constant 0 : index
    %c0_2 = arith.constant 0 : index
    %3 = vector.load %arg3[%c0, %c0_1, %c0_2] : memref<2x8x32xf32, #tpu.memory_space<vmem>>, vector<2x8x32xf32>
    %c0_3 = arith.constant 0 : index
    %c0_4 = arith.constant 0 : index
    %4 = vector.load %arg4[%c0_3, %c0_4] : memref<2x8xf32, #tpu.memory_space<vmem>>, vector<2x8xf32>
    %cst = arith.constant 1.000000e+00 : f32
    %5 = vector.broadcast %cst : f32 to vector<2x8xf32>
    %6 = arith.subf %5, %4 : vector<2x8xf32>
    %cst_5 = arith.constant 1.000000e+06 : f32
    %7 = vector.broadcast %cst_5 : f32 to vector<2x8xf32>
    %8 = arith.mulf %6, %7 : vector<2x8xf32>
    %9 = vector.shape_cast %8 : vector<2x8xf32> to vector<2x8x1xf32>
    %10 = vector.broadcast %9 : vector<2x8x1xf32> to vector<2x8x32xf32>
    %11 = arith.subf %3, %10 : vector<2x8x32xf32>
    %cst_6 = arith.constant dense<0xFF800000> : vector<2x32xf32>
    %12 = vector.multi_reduction <maximumf>, %11, %cst_6 [1] : vector<2x8x32xf32> to vector<2x32xf32>
    %c0_7 = arith.constant 0 : index
    %c0_8 = arith.constant 0 : index
    %13 = vector.load %arg5[%c0_7, %c0_8] : memref<2x32xf32, #tpu.memory_space<vmem>>, vector<2x32xf32>
    %14 = arith.maximumf %13, %12 : vector<2x32xf32>
    %c0_9 = arith.constant 0 : index
    %c0_10 = arith.constant 0 : index
    %15 = vector.load %arg5[%c0_9, %c0_10] : memref<2x32xf32, #tpu.memory_space<vmem>>, vector<2x32xf32>
    tpu.vector_store %arg5[%c0_9, %c0_10], %14 {strides = array<i32>} : memref<2x32xf32, #tpu.memory_space<vmem>>, vector<2x32xf32>,
    return
  }
  func.func @transform_0(%arg0: i32, %arg1: i32, %arg2: i32) -> (i32, i32, i32) {
    %c0_i32 = arith.constant 0 : i32
    return %arg0, %arg2, %arg1 : i32, i32, i32
  }
  func.func @transform_1(%arg0: i32, %arg1: i32, %arg2: i32) -> (i32, i32) {
    %c0_i32 = arith.constant 0 : i32
    return %arg0, %arg2 : i32, i32
  }
  func.func @transform_2(%arg0: i32, %arg1: i32, %arg2: i32) -> (i32, i32) {
    %c0_i32 = arith.constant 0 : i32
    return %arg0, %arg1 : i32, i32
  }
}

</mosaic_0001>

<llo_original>
// kernel: tpu_custom_call.1
$region0: #{tpu_custom_call.1}
  #allocation0 [shape = 'u32[]', space=smem, size = 0x4, offset = 0x4, fixed_abs, tag = 'smem constant byte address 0x4 - core index']
  #allocation1 [shape = 'u32[144,128]{1,0:T(1,128)}', space=vmem, size = 0x12000, scoped, tag = 'internal scratch']
  %s0 = inlined_call_operand.hbm [shape: f32[2,8,32], index: 0, kind: input, shape index: {}]
  %s1 = inlined_call_operand.vmem [shape: f32[2,8], index: 1, kind: input, shape index: {}]
  %s2 = inlined_call_operand.hbm [shape: f32[2,32], index: 2, kind: output, shape index: {}]
  %s3 = sld [smem:[#allocation0]]
  $region26: #{tpu_custom_call.1} parent=0
    _
  %s5 = ssub.s32 1, %s3
  %s6 = scalar_select 0, %s5, %s3
  $region1: #{tpu_custom_call.1} parent=0
    #allocation2 [shape = 'u8[8192]{0}', space=vmem, size = 0x2000, scoped, tag = 'input window, operand 0, single buffered']
    #allocation3 [shape = 's32[1]{0}', space=sflag, size = 0x4, scoped, tag = 'scoped memory for tpu_custom_call.1']
    #allocation4 [shape = 's32[1]{0}', space=sflag, size = 0x4, scoped, tag = 'scoped memory for tpu_custom_call.1']
    #allocation5 [shape = 'u8[1024]{0}', space=vmem, size = 0x400, scoped, tag = 'output window, operand 0, single buffered']
    %7 = vsyncpa [#allocation3], 0
    %8 = vsyncpa [#allocation4], 0
    // Predicated region
    $region2: #{tpu_custom_call.1} parent=1 // pred_check
      _
    $region3: #{tpu_custom_call.1} parent=1 // pred_check_branch
      %10 = sbr.rel (0) target = $region5
    $region4: #{tpu_custom_call.1} parent=1 // pred_region
      %s12 = ssub.s32 256, 256
      %13 = vsyncadd [#allocation3], %s12
      %s14 = sshll.u32 [#allocation2], 4
      %s15 = int_to_ptr.vmem [resolvable:$true] %s14
      %20 = dma.hbm_to_vmem [thread:$0]  %s0, 256, %s15, [#allocation3], 128, 128, 8
    $region5: #{tpu_custom_call.1} parent=1 // pred_fallthru
      _
    // Predicated region
    $region6: #{tpu_custom_call.1} parent=1 // pred_check
      _
    $region7: #{tpu_custom_call.1} parent=1 // pred_check_branch
      %22 = sbr.rel (0) target = $region9
    $region8: #{tpu_custom_call.1} parent=1 // pred_region
      _
    $region9: #{tpu_custom_call.1} parent=1 // pred_fallthru
      _
    // Predicated region
    $region10: #{tpu_custom_call.1} parent=1 // pred_check
      _
    $region11: #{tpu_custom_call.1} parent=1 // pred_check_branch
      %24 = sbr.rel (0) target = $region13
    $region12: #{tpu_custom_call.1} parent=1 // pred_region
      %25 = dma.done [#allocation3], 256
    $region13: #{tpu_custom_call.1} parent=1 // pred_fallthru
      _
    %p26 = scmp.eq.s32.totalorder 0, 0
    // Predicated region
    $region14: #{tpu_custom_call.1} parent=1 // pred_check
      %p27 = pneg %p26
    $region15: #{tpu_custom_call.1} parent=1 // pred_check_branch
      %29 = sbr.rel (%p27) target = $region17
    $region16: #{tpu_custom_call.1} parent=1 // pred_region
      %vm30 = vcmask 254976
      %31 = vst.msk [vmem:[#allocation5] sm:$0x3] %vm30, -3.4028235e+38
    $region17: #{tpu_custom_call.1} parent=1 // pred_fallthru
      _
    %v32 = vld [vmem:[#allocation2] sm:$0xff]
    %v33 = vld [vmem:[#allocation2 + $0x8] sm:$0xff]
    %v34 = vld [vmem:[%s1] sm:$0x3]
    %v35 = vsub.f32 1.0, %v34
    %v36 = vmul.f32 %v35, 1000000.0
    %v37 = vlaneseq
    %v38 = vshrl.u32 %v37, 7
    %v39 = vsub.s32 0, %v38
    %v40 = vrot.slane %v36, %v39
    %42 = vbcast.lane.b32.xlu0 %v40, 256
    %v43 = vpop.permute.xlu0 %42
    %v44 = vlaneseq
    %v45 = vshrl.u32 %v44, 7
    %v46 = vsub.s32 1, %v45
    %v47 = vrot.slane %v36, %v46
    %49 = vbcast.lane.b32.xlu0 %v47, 256
    %v50 = vpop.permute.xlu0 %49
    %v51 = vsub.f32 %v32, %v43
    %v52 = vsub.f32 %v33, %v50
    %vm53 = vcmask 261120
    %v54 = vsel %vm53, %v51, -inf
    %v55 = vrot.slane %v54, 4
    %v56 = vmax.f32 %v54, %v55
    %v57 = vrot.slane %v56, 2
    %v58 = vmax.f32 %v56, %v57
    %v59 = vrot.slane %v58, 1
    %v60 = vmax.f32 %v58, %v59
    %v61 = vsel %vm53, %v52, -inf
    %v62 = vrot.slane %v61, 4
    %v63 = vmax.f32 %v61, %v62
    %v64 = vrot.slane %v63, 2
    %v65 = vmax.f32 %v63, %v64
    %v66 = vrot.slane %v65, 1
    %v67 = vmax.f32 %v65, %v66
    %v68 = vld [vmem:[#allocation5] sm:$0x3]
    %vm71 = vcmask 1041409
    %v72 = vsel %vm71, %v67, %v60
    %v74 = vmax.f32 %v68, %v72
    %vm75 = vcmask 254976
    %76 = vst.msk [vmem:[#allocation5] sm:$0x3] %vm75, %v74
    // Predicated region
    $region18: #{tpu_custom_call.1} parent=1 // pred_check
      _
    $region19: #{tpu_custom_call.1} parent=1 // pred_check_branch
      %78 = sbr.rel (0) target = $region21
    $region20: #{tpu_custom_call.1} parent=1 // pred_region
      %s80 = ssub.s32 32, 32
      %81 = vsyncadd [#allocation4], %s80
      %s83 = sshll.u32 [#allocation5], 4
      %s84 = int_to_ptr.vmem [resolvable:$true] %s83
      %86 = dma.vmem_to_hbm [thread:$0]  %s84, 32, %s2, [#allocation4]
    $region21: #{tpu_custom_call.1} parent=1 // pred_fallthru
      _
    // Predicated region
    $region22: #{tpu_custom_call.1} parent=1 // pred_check
      _
    $region23: #{tpu_custom_call.1} parent=1 // pred_check_branch
      %88 = sbr.rel (0) target = $region25
    $region24: #{tpu_custom_call.1} parent=1 // pred_region
      %89 = dma.done [#allocation4], 32
    $region25: #{tpu_custom_call.1} parent=1 // pred_fallthru
      _
    %90 = vsyncpa [#allocation3], 1
    %91 = vsyncpa [#allocation4], 1

</llo_original>
